<compile_context>
chip_gen: v7x
topology: tpu7x:2x2x1
jax: 0.10.0
libtpu: 0.0.40
codegen_flags: <defaults>
</compile_context>

<pallas_src>
import numpy as np
import jax
import jax.numpy as jnp
from jax import lax
from jax.experimental import pallas as pl
from jax.experimental.pallas import tpu as pltpu

B, CIN, H, W = 2, 1, 4, 8          # maxpool(2x2) -> 2x4 spatial, 32*2*4 = 256 = fc.in_features
COUT = 32
HP, WP = H // 2, W // 2            # 2, 4
FEAT = COUT * HP * WP              # 256  (fc.in_features)
NCONV = 4 * FEAT                   # 1024 conv lanes: (dh, dw, h', w', cout)


def _kernel(x1_ref, x2_ref, r1_ref, r2_ref, bias_ref, fcv_ref, bfc_ref, out_ref):
    """x*: (B, H*W) flattened images; r*: (H*W, 1024) conv-as-one-matmul
    matrices, lanes = (dh, dw, h', w', cout) with 3x3 taps, zero padding and
    both 2x2-pool parities folded in; bias: (2B, 1024) per-branch conv bias;
    fcv: (256, 1) fc weight permuted to (h', w', cout) order; bfc: (1,) scalar
    in SMEM; out: (2B, 1)."""
    # Conv per branch: one MXU push each (whole conv incl. padding is in r*).
    z1 = jnp.dot(x1_ref[...], r1_ref[...], preferred_element_type=jnp.float32)  # (B, 1024)
    z2 = jnp.dot(x2_ref[...], r2_ref[...], preferred_element_type=jnp.float32)  # (B, 1024)
    # torch.cat((x1, x2)) along batch == this row order (branch, b); it also
    # lets bias+ReLU and both pooling maxima run once on a single tile.
    z = jnp.concatenate([z1, z2], axis=0)                                        # (2B, 1024)
    z = jnp.maximum(z + bias_ref[...], 0.0)                                      # bias + ReLU
    zh = jnp.maximum(z[:, :2 * FEAT], z[:, 2 * FEAT:])   # maxpool height: dh lane halves
    zp = jnp.maximum(zh[:, :FEAT], zh[:, FEAT:])         # maxpool width:  dw lane halves
    # Linear(256 -> 1): one dot against the permuted fc vector, scalar bias from SMEM.
    out_ref[...] = (jnp.dot(zp, fcv_ref[...], preferred_element_type=jnp.float32)
                    + bfc_ref[0])


def prepare_params(params):
    """One-time re-layout of the PyTorch-style parameters into kernel operands
    (pure permutations / zero-embeddings, hoisted out of the per-call graph)."""
    def conv_matrix(w):
        # Fold the whole 3x3 'same' conv (incl. zero padding) and the 2x2-pool
        # output parities into one (H*W, 1024) matmul matrix with lane order
        # (dh, dw, h', w', cout).
        w = np.asarray(w, np.float32)[:, 0]                  # (COUT, 3, 3)
        r = np.zeros((H * W, NCONV), np.float32)
        for dh in range(2):
            for dw in range(2):
                for hp in range(HP):
                    for wp in range(WP):
                        h, wo = 2 * hp + dh, 2 * wp + dw     # conv output pixel
                        lane0 = ((dh * 2 + dw) * HP + hp) * WP * COUT + wp * COUT
                        for kh in range(3):
                            for kw in range(3):
                                i, j = h + kh - 1, wo + kw - 1
                                if 0 <= i < H and 0 <= j < W:
                                    r[i * W + j, lane0:lane0 + COUT] = w[:, kh, kw]
        return jnp.asarray(r)

    b1 = np.tile(np.asarray(params["conv1_b"], np.float32), NCONV // COUT)
    b2 = np.tile(np.asarray(params["conv2_b"], np.float32), NCONV // COUT)
    bias = np.stack([b1] * B + [b2] * B, axis=0)             # (2B, 1024), rows match concat order

    # fc weight over torch's C-major flatten (c, h', w') -> lanes (h', w', c)
    fc = np.asarray(params["fc_w"], np.float32).reshape(COUT, HP, WP)
    fcv = np.transpose(fc, (1, 2, 0)).reshape(FEAT, 1)       # (256, 1)
    bfc = np.asarray(params["fc_b"], np.float32).reshape(1)  # true scalar -> SMEM
    return {"r1": conv_matrix(params["conv1_w"]),
            "r2": conv_matrix(params["conv2_w"]),
            "bias": jnp.asarray(bias),
            "fcv": jnp.asarray(fcv),
            "bfc": jnp.asarray(bfc)}


@jax.jit
def multi_input_regression_forward(x1, x2, kparams):
    # The only wrapper-side ops are layout-free reshapes (bitcasts of the
    # contiguous NCHW inputs); no jnp.pad / im2col HLOs remain.
    x1f = x1.reshape(B, H * W)
    x2f = x2.reshape(B, H * W)
    vmem = pl.BlockSpec(memory_space=pltpu.MemorySpace.VMEM)
    smem = pl.BlockSpec(memory_space=pltpu.MemorySpace.SMEM)
    return pl.pallas_call(
        _kernel,
        out_shape=jax.ShapeDtypeStruct((2 * B, 1), jnp.float32),
        in_specs=[vmem, vmem, vmem, vmem, vmem, vmem, smem],
        out_specs=vmem,
    )(x1f, x2f, kparams["r1"], kparams["r2"], kparams["bias"],
      kparams["fcv"], kparams["bfc"])


def init_params(key):
    ks = jax.random.split(key, 6)
    return {
        "conv1_w": 0.1 * jax.random.normal(ks[0], (COUT, CIN, 3, 3), jnp.float32),
        "conv1_b": 0.1 * jax.random.normal(ks[1], (COUT,), jnp.float32),
        "conv2_w": 0.1 * jax.random.normal(ks[2], (COUT, CIN, 3, 3), jnp.float32),
        "conv2_b": 0.1 * jax.random.normal(ks[3], (COUT,), jnp.float32),
        "fc_w": 0.1 * jax.random.normal(ks[4], (1, FEAT), jnp.float32),
        "fc_b": 0.1 * jax.random.normal(ks[5], (1,), jnp.float32),
    }


def reference_forward(x1, x2, params):
    """Pure-JAX reference mirroring the PyTorch forward exactly (NCHW)."""
    def branch(x, w, b):
        y = lax.conv_general_dilated(x, w, (1, 1), ((1, 1), (1, 1)),
                                     dimension_numbers=("NCHW", "OIHW", "NCHW"))
        y = jnp.maximum(y + b.reshape(1, -1, 1, 1), 0.0)
        return lax.reduce_window(y, -jnp.inf, lax.max,
                                 (1, 1, 2, 2), (1, 1, 2, 2), "VALID")
    y = jnp.concatenate([branch(x1, params["conv1_w"], params["conv1_b"]),
                         branch(x2, params["conv2_w"], params["conv2_b"])], axis=0)
    y = y.reshape(y.shape[0], -1)
    return y @ params["fc_w"].T + params["fc_b"]


if __name__ == "__main__":
    key = jax.random.PRNGKey(0)
    kx1, kx2, kp = jax.random.split(key, 3)
    x1 = jax.random.normal(kx1, (B, CIN, H, W), jnp.float32)
    x2 = jax.random.normal(kx2, (B, CIN, H, W), jnp.float32)
    params = init_params(kp)
    kparams = prepare_params(params)       # one-time parameter re-layout

    out = multi_input_regression_forward(x1, x2, kparams)
    jax.block_until_ready(out)

    ref = reference_forward(x1, x2, params)
    assert out.shape == (2 * B, 1), out.shape
    assert jnp.allclose(out, ref, atol=1e-4, rtol=1e-4), (out, ref)
    print("KERNEL_OK")
</pallas_src>

<mosaic_0001>
module attributes {stable_mosaic.version = 11 : i64} {
  func.func @_kernel(%arg0: memref<2x32xf32, #tpu.memory_space<vmem>>, %arg1: memref<2x32xf32, #tpu.memory_space<vmem>>, %arg2: memref<32x1024xf32, #tpu.memory_space<vmem>>, %arg3: memref<32x1024xf32, #tpu.memory_space<vmem>>, %arg4: memref<4x1024xf32, #tpu.memory_space<vmem>>, %arg5: memref<256x1xf32, #tpu.memory_space<vmem>>, %arg6: memref<1xf32, #tpu.memory_space<smem>>, %arg7: memref<4x1xf32, #tpu.memory_space<vmem>>) attributes {dimension_semantics = [], scalar_prefetch = 0 : i64, scratch_operands = 0 : i64, tpu.core_type = #tpu.core_type<tc>} {
    %c0 = arith.constant 0 : index
    %c0_0 = arith.constant 0 : index
    %0 = vector.load %arg0[%c0, %c0_0] : memref<2x32xf32, #tpu.memory_space<vmem>>, vector<2x32xf32>
    %c0_1 = arith.constant 0 : index
    %c0_2 = arith.constant 0 : index
    %1 = vector.load %arg2[%c0_1, %c0_2] : memref<32x1024xf32, #tpu.memory_space<vmem>>, vector<32x1024xf32>
    %cst = arith.constant dense<0.000000e+00> : vector<2x1024xf32>
    %2 = tpu.matmul %0, %1, %cst {dimension_numbers = #tpu.dot_dimension_numbers<[1], [0], [0], [1], [0, 0, 1, 1], [], []>} : vector<2x32xf32>, vector<32x1024xf32>, vector<2x1024xf32> -> vector<2x1024xf32>
    %c0_3 = arith.constant 0 : index
    %c0_4 = arith.constant 0 : index
    %3 = vector.load %arg1[%c0_3, %c0_4] : memref<2x32xf32, #tpu.memory_space<vmem>>, vector<2x32xf32>
    %c0_5 = arith.constant 0 : index
    %c0_6 = arith.constant 0 : index
    %4 = vector.load %arg3[%c0_5, %c0_6] : memref<32x1024xf32, #tpu.memory_space<vmem>>, vector<32x1024xf32>
    %cst_7 = arith.constant dense<0.000000e+00> : vector<2x1024xf32>
    %5 = tpu.matmul %3, %4, %cst_7 {dimension_numbers = #tpu.dot_dimension_numbers<[1], [0], [0], [1], [0, 0, 1, 1], [], []>} : vector<2x32xf32>, vector<32x1024xf32>, vector<2x1024xf32> -> vector<2x1024xf32>
    %6 = tpu.concatenate %2, %5 in 0 : vector<2x1024xf32>, vector<2x1024xf32> -> vector<4x1024xf32>
    %c0_8 = arith.constant 0 : index
    %c0_9 = arith.constant 0 : index
    %7 = vector.load %arg4[%c0_8, %c0_9] : memref<4x1024xf32, #tpu.memory_space<vmem>>, vector<4x1024xf32>
    %8 = arith.addf %6, %7 : vector<4x1024xf32>
    %cst_10 = arith.constant 0.000000e+00 : f32
    %9 = vector.broadcast %cst_10 : f32 to vector<4x1024xf32>
    %10 = arith.maximumf %8, %9 : vector<4x1024xf32>
    %11 = vector.extract_strided_slice %10 {offsets = [0, 0], sizes = [4, 512], strides = [1, 1]} : vector<4x1024xf32> to vector<4x512xf32>
    %12 = vector.extract_strided_slice %10 {offsets = [0, 512], sizes = [4, 512], strides = [1, 1]} : vector<4x1024xf32> to vector<4x512xf32>
    %13 = arith.maximumf %11, %12 : vector<4x512xf32>
    %14 = vector.extract_strided_slice %13 {offsets = [0, 0], sizes = [4, 256], strides = [1, 1]} : vector<4x512xf32> to vector<4x256xf32>
    %15 = vector.extract_strided_slice %13 {offsets = [0, 256], sizes = [4, 256], strides = [1, 1]} : vector<4x512xf32> to vector<4x256xf32>
    %16 = arith.maximumf %14, %15 : vector<4x256xf32>
    %c0_11 = arith.constant 0 : index
    %c0_12 = arith.constant 0 : index
    %17 = vector.load %arg5[%c0_11, %c0_12] : memref<256x1xf32, #tpu.memory_space<vmem>>, vector<256x1xf32>
    %cst_13 = arith.constant dense<0.000000e+00> : vector<4x1xf32>
    %18 = tpu.matmul %16, %17, %cst_13 {dimension_numbers = #tpu.dot_dimension_numbers<[1], [0], [0], [1], [0, 0, 1, 1], [], []>} : vector<4x256xf32>, vector<256x1xf32>, vector<4x1xf32> -> vector<4x1xf32>
    %c0_14 = arith.constant 0 : index
    %19 = memref.load %arg6[%c0_14] : memref<1xf32, #tpu.memory_space<smem>>
    %20 = vector.broadcast %19 : f32 to vector<4x1xf32>
    %21 = arith.addf %18, %20 : vector<4x1xf32>
    %c0_15 = arith.constant 0 : index
    %c0_16 = arith.constant 0 : index
    %22 = vector.load %arg7[%c0_15, %c0_16] : memref<4x1xf32, #tpu.memory_space<vmem>>, vector<4x1xf32>
    tpu.vector_store %arg7[%c0_15, %c0_16], %21 {strides = array<i32>} : memref<4x1xf32, #tpu.memory_space<vmem>>, vector<4x1xf32>,
    return
  }
}

</mosaic_0001>

<llo_original>
// kernel: multi_input_regression_forward.1
$region0: #{multi_input_regression_forward.1}
  #allocation0 [shape = 'u32[]', space=smem, size = 0x4, offset = 0x4, fixed_abs, tag = 'smem constant byte address 0x4 - core index']
  #allocation1 [shape = 'u32[144,128]{1,0:T(1,128)}', space=vmem, size = 0x12000, scoped, tag = 'internal scratch']
  #allocation2 [shape = 'f32[1]{0:T(128)S(6)}', space=smem, size = 0x200, scoped, tag = 'scoped memory for multi_input_regression_forward.1']
  %s0 = inlined_call_operand.vmem [shape: f32[2,32], index: 0, kind: input, shape index: {}]
  %s1 = inlined_call_operand.vmem [shape: f32[2,32], index: 1, kind: input, shape index: {}]
  %s2 = inlined_call_operand.vmem [shape: f32[32,1024], index: 2, kind: input, shape index: {}]
  %s3 = inlined_call_operand.hbm [shape: f32[32,1024], index: 3, kind: input, shape index: {}]
  %s4 = inlined_call_operand.vmem [shape: f32[4,1024], index: 4, kind: input, shape index: {}]
  %s5 = inlined_call_operand.vmem [shape: f32[256,1], index: 5, kind: input, shape index: {}]
  %s6 = inlined_call_operand.<no memory space> [shape: f32[1], index: 6, kind: input, shape index: {}]
  %s7 = inlined_call_operand.vmem [shape: f32[4,1], index: 7, kind: output, shape index: {}]
  %s8 = sld [smem:[#allocation0]]
  $region42: #{multi_input_regression_forward.1} parent=0
    _
  %s10 = ssub.s32 1, %s8
  %s11 = scalar_select 0, %s10, %s8
  %12 = sst [smem:[#allocation2]] %s6
  $region1: #{multi_input_regression_forward.1} parent=0
    #allocation3 [shape = 'u8[131072]{0}', space=vmem, size = 0x20000, scoped, tag = 'input window, operand 3, single buffered']
    #allocation4 [shape = 's32[1]{0}', space=sflag, size = 0x4, scoped, tag = 'scoped memory for multi_input_regression_forward.1']
    %13 = vsyncpa [#allocation4], 0
    // Predicated region
    $region2: #{multi_input_regression_forward.1} parent=1 // pred_check
      _
    $region3: #{multi_input_regression_forward.1} parent=1 // pred_check_branch
      %15 = sbr.rel (0) target = $region5
    $region4: #{multi_input_regression_forward.1} parent=1 // pred_region
      _
    $region5: #{multi_input_regression_forward.1} parent=1 // pred_fallthru
      _
    // Predicated region
    $region6: #{multi_input_regression_forward.1} parent=1 // pred_check
      _
    $region7: #{multi_input_regression_forward.1} parent=1 // pred_check_branch
      %17 = sbr.rel (0) target = $region9
    $region8: #{multi_input_regression_forward.1} parent=1 // pred_region
      _
    $region9: #{multi_input_regression_forward.1} parent=1 // pred_fallthru
      _
    // Predicated region
    $region10: #{multi_input_regression_forward.1} parent=1 // pred_check
      _
    $region11: #{multi_input_regression_forward.1} parent=1 // pred_check_branch
      %19 = sbr.rel (0) target = $region13
    $region12: #{multi_input_regression_forward.1} parent=1 // pred_region
      _
    $region13: #{multi_input_regression_forward.1} parent=1 // pred_fallthru
      _
    // Predicated region
    $region14: #{multi_input_regression_forward.1} parent=1 // pred_check
      _
    $region15: #{multi_input_regression_forward.1} parent=1 // pred_check_branch
      %21 = sbr.rel (0) target = $region17
    $region16: #{multi_input_regression_forward.1} parent=1 // pred_region
      %s23 = ssub.s32 4096, 4096
      %24 = vsyncadd [#allocation4], %s23
      %s25 = sshll.u32 [#allocation3], 4
      %s26 = int_to_ptr.vmem [resolvable:$true] %s25
      %31 = dma.hbm_to_vmem [thread:$0]  %s3, 4096, %s26, [#allocation4], 1024, 1024, 64
    $region17: #{multi_input_regression_forward.1} parent=1 // pred_fallthru
      _
    // Predicated region
    $region18: #{multi_input_regression_forward.1} parent=1 // pred_check
      _
    $region19: #{multi_input_regression_forward.1} parent=1 // pred_check_branch
      %33 = sbr.rel (0) target = $region21
    $region20: #{multi_input_regression_forward.1} parent=1 // pred_region
      _
    $region21: #{multi_input_regression_forward.1} parent=1 // pred_fallthru
      _
    // Predicated region
    $region22: #{multi_input_regression_forward.1} parent=1 // pred_check
      _
    $region23: #{multi_input_regression_forward.1} parent=1 // pred_check_branch
      %35 = sbr.rel (0) target = $region25
    $region24: #{multi_input_regression_forward.1} parent=1 // pred_region
      _
    $region25: #{multi_input_regression_forward.1} parent=1 // pred_fallthru
      _
    // Predicated region
    $region26: #{multi_input_regression_forward.1} parent=1 // pred_check
      _
    $region27: #{multi_input_regression_forward.1} parent=1 // pred_check_branch
      %37 = sbr.rel (0) target = $region29
    $region28: #{multi_input_regression_forward.1} parent=1 // pred_region
      _
    $region29: #{multi_input_regression_forward.1} parent=1 // pred_fallthru
      _
    // Predicated region
    $region30: #{multi_input_regression_forward.1} parent=1 // pred_check
      _
    $region31: #{multi_input_regression_forward.1} parent=1 // pred_check_branch
      %39 = sbr.rel (0) target = $region33
    $region32: #{multi_input_regression_forward.1} parent=1 // pred_region
      %40 = dma.done [#allocation4], 4096
    $region33: #{multi_input_regression_forward.1} parent=1 // pred_fallthru
      _
    %v41 = vld [vmem:[%s0] sm:$0x3]
    %v42 = vld [vmem:[%s2] sm:$0xff]
    %v43 = vld [vmem:[%s2 + $0x8] sm:$0xff]
    %v44 = vld [vmem:[%s2 + $0x10] sm:$0xff]
    %v45 = vld [vmem:[%s2 + $0x18] sm:$0xff]
    %v46 = vld [vmem:[%s2 + $0x20] sm:$0xff]
    %v47 = vld [vmem:[%s2 + $0x28] sm:$0xff]
    %v48 = vld [vmem:[%s2 + $0x30] sm:$0xff]
    %v49 = vld [vmem:[%s2 + $0x38] sm:$0xff]
    %v50 = vld [vmem:[%s2 + $0x40] sm:$0xff]
    %v51 = vld [vmem:[%s2 + $0x48] sm:$0xff]
    %v52 = vld [vmem:[%s2 + $0x50] sm:$0xff]
    %v53 = vld [vmem:[%s2 + $0x58] sm:$0xff]
    %v54 = vld [vmem:[%s2 + $0x60] sm:$0xff]
    %v55 = vld [vmem:[%s2 + $0x68] sm:$0xff]
    %v56 = vld [vmem:[%s2 + $0x70] sm:$0xff]
    %v57 = vld [vmem:[%s2 + $0x78] sm:$0xff]
    %v58 = vld [vmem:[%s2 + $0x80] sm:$0xff]
    %v59 = vld [vmem:[%s2 + $0x88] sm:$0xff]
    %v60 = vld [vmem:[%s2 + $0x90] sm:$0xff]
    %v61 = vld [vmem:[%s2 + $0x98] sm:$0xff]
    %v62 = vld [vmem:[%s2 + $0xa0] sm:$0xff]
    %v63 = vld [vmem:[%s2 + $0xa8] sm:$0xff]
    %v64 = vld [vmem:[%s2 + $0xb0] sm:$0xff]
    %v65 = vld [vmem:[%s2 + $0xb8] sm:$0xff]
    %v66 = vld [vmem:[%s2 + $0xc0] sm:$0xff]
    %v67 = vld [vmem:[%s2 + $0xc8] sm:$0xff]
    %v68 = vld [vmem:[%s2 + $0xd0] sm:$0xff]
    %v69 = vld [vmem:[%s2 + $0xd8] sm:$0xff]
    %v70 = vld [vmem:[%s2 + $0xe0] sm:$0xff]
    %v71 = vld [vmem:[%s2 + $0xe8] sm:$0xff]
    %v72 = vld [vmem:[%s2 + $0xf0] sm:$0xff]
    %v73 = vld [vmem:[%s2 + $0xf8] sm:$0xff]
    %vm74 = vcmask 261120
    %v76 = vsel %vm74, %v41, 0
    %78 = vmatprep.subr.mxu0 %v43
    %79 = vmatpush1.msra.mxu0 %v42
    %80 = vmatprep.subr.mxu0 %v51
    %81 = vmatpush1.msra.mxu0 %v50
    %82 = vmatprep.subr.mxu0 %v59
    %83 = vmatpush1.msra.mxu0 %v58
    %84 = vmatprep.subr.mxu0 %v67
    %85 = vmatpush1.msra.mxu0 %v66
    %86 = vmatprep.subr.mxu0 0.0
    %87 = vmatpush1.msra.mxu0 0.0
    %88 = vmatprep.subr.mxu0 0.0
    %89 = vmatpush1.msra.mxu0 0.0
    %90 = vmatprep.subr.mxu0 0.0
    %91 = vmatpush1.msra.mxu0 0.0
    %92 = vmatprep.subr.mxu0 0.0
    %93 = vmatpush1.msra.mxu0 0.0
    %94 = vmatprep.subr.mxu0 0.0
    %95 = vmatpush1.msra.mxu0 0.0
    %96 = vmatprep.subr.mxu0 0.0
    %97 = vmatpush1.msra.mxu0 0.0
    %98 = vmatprep.subr.mxu0 0.0
    %99 = vmatpush1.msra.mxu0 0.0
    %100 = vmatprep.subr.mxu0 0.0
    %101 = vmatpush1.msra.mxu0 0.0
    %102 = vmatprep.subr.mxu0 0.0
    %103 = vmatpush1.msra.mxu0 0.0
    %104 = vmatprep.subr.mxu0 0.0
    %105 = vmatpush1.msra.mxu0 0.0
    %106 = vmatprep.subr.mxu0 0.0
    %107 = vmatpush1.msra.mxu0 0.0
    %108 = vmatprep.subr.mxu0 0.0
    %109 = vmatpush1.msra.mxu0 0.0
    %110 = vmatprep.subr.mxu0 0.0
    %111 = vmatpush1.msra.mxu0 0.0
    %112 = vmatprep.subr.mxu0 0.0
    %113 = vmatpush1.msra.mxu0 0.0
    %114 = vmatprep.subr.mxu0 0.0
    %115 = vmatpush1.msra.mxu0 0.0
    %116 = vmatprep.subr.mxu0 0.0
    %117 = vmatpush1.msra.mxu0 0.0
    %118 = vmatprep.subr.mxu0 0.0
    %119 = vmatpush1.msra.mxu0 0.0
    %120 = vmatprep.subr.mxu0 0.0
    %121 = vmatpush1.msra.mxu0 0.0
    %122 = vmatprep.subr.mxu0 0.0
    %123 = vmatpush1.msra.mxu0 0.0
    %124 = vmatprep.subr.mxu0 0.0
    %125 = vmatpush1.msra.mxu0 0.0
    %126 = vmatprep.subr.mxu0 0.0
    %127 = vmatpush1.msra.mxu0 0.0
    %128 = vmatprep.subr.mxu0 0.0
    %129 = vmatpush1.msra.mxu0 0.0
    %130 = vmatprep.subr.mxu0 0.0
    %131 = vmatpush1.msra.mxu0 0.0
    %132 = vmatprep.subr.mxu0 0.0
    %133 = vmatpush1.msra.mxu0 0.0
    %134 = vmatprep.subr.mxu0 0.0
    %135 = vmatpush1.msra.mxu0 0.0
    %136 = vmatprep.subr.mxu0 0.0
    %137 = vmatpush1.msra.mxu0 0.0
    %138 = vmatprep.subr.mxu0 0.0
    %139 = vmatpush1.msra.mxu0 0.0
    %140 = vmatprep.subr.mxu0 0.0
    %141 = vmatpush1.msra.mxu0 0.0
    %142 = vmatprep.mubr.f32.mxu0 0.0
    %143 = vmatmul.mubr.f32.gmra.mrb[0].mxu0 %v76
    %v144 = vpop.f32.mrb[0].mxu0
    %v145 = vadd.f32 0.0, %v144
    %v146 = vpop.f32.mrb[0].mxu0
    %v147 = vadd.f32 0.0, %v146
    %148 = vdwg.mxu0
    %149 = vmatprep.subr.mxu0 %v45
    %150 = vmatpush1.msra.mxu0 %v44
    %151 = vmatprep.subr.mxu0 %v53
    %152 = vmatpush1.msra.mxu0 %v52
    %153 = vmatprep.subr.mxu0 %v61
    %154 = vmatpush1.msra.mxu0 %v60
    %155 = vmatprep.subr.mxu0 %v69
    %156 = vmatpush1.msra.mxu0 %v68
    %157 = vmatprep.subr.mxu0 0.0
    %158 = vmatpush1.msra.mxu0 0.0
    %159 = vmatprep.subr.mxu0 0.0
    %160 = vmatpush1.msra.mxu0 0.0
    %161 = vmatprep.subr.mxu0 0.0
    %162 = vmatpush1.msra.mxu0 0.0
    %163 = vmatprep.subr.mxu0 0.0
    %164 = vmatpush1.msra.mxu0 0.0
    %165 = vmatprep.subr.mxu0 0.0
    %166 = vmatpush1.msra.mxu0 0.0
    %167 = vmatprep.subr.mxu0 0.0
    %168 = vmatpush1.msra.mxu0 0.0
    %169 = vmatprep.subr.mxu0 0.0
    %170 = vmatpush1.msra.mxu0 0.0
    %171 = vmatprep.subr.mxu0 0.0
    %172 = vmatpush1.msra.mxu0 0.0
    %173 = vmatprep.subr.mxu0 0.0
    %174 = vmatpush1.msra.mxu0 0.0
    %175 = vmatprep.subr.mxu0 0.0
    %176 = vmatpush1.msra.mxu0 0.0
    %177 = vmatprep.subr.mxu0 0.0
    %178 = vmatpush1.msra.mxu0 0.0
    %179 = vmatprep.subr.mxu0 0.0
    %180 = vmatpush1.msra.mxu0 0.0
    %181 = vmatprep.subr.mxu0 0.0
    %182 = vmatpush1.msra.mxu0 0.0
    %183 = vmatprep.subr.mxu0 0.0
    %184 = vmatpush1.msra.mxu0 0.0
    %185 = vmatprep.subr.mxu0 0.0
    %186 = vmatpush1.msra.mxu0 0.0
    %187 = vmatprep.subr.mxu0 0.0
    %188 = vmatpush1.msra.mxu0 0.0
    %189 = vmatprep.subr.mxu0 0.0
    %190 = vmatpush1.msra.mxu0 0.0
    %191 = vmatprep.subr.mxu0 0.0
    %192 = vmatpush1.msra.mxu0 0.0
    %193 = vmatprep.subr.mxu0 0.0
    %194 = vmatpush1.msra.mxu0 0.0
    %195 = vmatprep.subr.mxu0 0.0
    %196 = vmatpush1.msra.mxu0 0.0
    %197 = vmatprep.subr.mxu0 0.0
    %198 = vmatpush1.msra.mxu0 0.0
    %199 = vmatprep.subr.mxu0 0.0
    %200 = vmatpush1.msra.mxu0 0.0
    %201 = vmatprep.subr.mxu0 0.0
    %202 = vmatpush1.msra.mxu0 0.0
    %203 = vmatprep.subr.mxu0 0.0
    %204 = vmatpush1.msra.mxu0 0.0
    %205 = vmatprep.subr.mxu0 0.0
    %206 = vmatpush1.msra.mxu0 0.0
    %207 = vmatprep.subr.mxu0 0.0
    %208 = vmatpush1.msra.mxu0 0.0
    %209 = vmatprep.subr.mxu0 0.0
    %210 = vmatpush1.msra.mxu0 0.0
    %211 = vmatprep.subr.mxu0 0.0
    %212 = vmatpush1.msra.mxu0 0.0
    %213 = vmatprep.mubr.f32.mxu0 0.0
    %214 = vmatmul.mubr.f32.gmra.mrb[0].mxu0 %v76
    %v215 = vpop.f32.mrb[0].mxu0
    %v216 = vadd.f32 0.0, %v215
    %v217 = vpop.f32.mrb[0].mxu0
    %v218 = vadd.f32 0.0, %v217
    %219 = vdwg.mxu0
    %220 = vmatprep.subr.mxu0 %v47
    %221 = vmatpush1.msra.mxu0 %v46
    %222 = vmatprep.subr.mxu0 %v55
    %223 = vmatpush1.msra.mxu0 %v54
    %224 = vmatprep.subr.mxu0 %v63
    %225 = vmatpush1.msra.mxu0 %v62
    %226 = vmatprep.subr.mxu0 %v71
    %227 = vmatpush1.msra.mxu0 %v70
    %228 = vmatprep.subr.mxu0 0.0
    %229 = vmatpush1.msra.mxu0 0.0
    %230 = vmatprep.subr.mxu0 0.0
    %231 = vmatpush1.msra.mxu0 0.0
    %232 = vmatprep.subr.mxu0 0.0
    %233 = vmatpush1.msra.mxu0 0.0
    %234 = vmatprep.subr.mxu0 0.0
    %235 = vmatpush1.msra.mxu0 0.0
    %236 = vmatprep.subr.mxu0 0.0
    %237 = vmatpush1.msra.mxu0 0.0
    %238 = vmatprep.subr.mxu0 0.0
    %239 = vmatpush1.msra.mxu0 0.0
    %240 = vmatprep.subr.mxu0 0.0
    %241 = vmatpush1.msra.mxu0 0.0
    %242 = vmatprep.subr.mxu0 0.0
    %243 = vmatpush1.msra.mxu0 0.0
    %244 = vmatprep.subr.mxu0 0.0
    %245 = vmatpush1.msra.mxu0 0.0
    %246 = vmatprep.subr.mxu0 0.0
    %247 = vmatpush1.msra.mxu0 0.0
    %248 = vmatprep.subr.mxu0 0.0
    %249 = vmatpush1.msra.mxu0 0.0
    %250 = vmatprep.subr.mxu0 0.0
    %251 = vmatpush1.msra.mxu0 0.0
    %252 = vmatprep.subr.mxu0 0.0
    %253 = vmatpush1.msra.mxu0 0.0
    %254 = vmatprep.subr.mxu0 0.0
    %255 = vmatpush1.msra.mxu0 0.0
    %256 = vmatprep.subr.mxu0 0.0
    %257 = vmatpush1.msra.mxu0 0.0
    %258 = vmatprep.subr.mxu0 0.0
    %259 = vmatpush1.msra.mxu0 0.0
    %260 = vmatprep.subr.mxu0 0.0
    %261 = vmatpush1.msra.mxu0 0.0
    %262 = vmatprep.subr.mxu0 0.0
    %263 = vmatpush1.msra.mxu0 0.0
    %264 = vmatprep.subr.mxu0 0.0
    %265 = vmatpush1.msra.mxu0 0.0
    %266 = vmatprep.subr.mxu0 0.0
    %267 = vmatpush1.msra.mxu0 0.0
    %268 = vmatprep.subr.mxu0 0.0
    %269 = vmatpush1.msra.mxu0 0.0
    %270 = vmatprep.subr.mxu0 0.0
    %271 = vmatpush1.msra.mxu0 0.0
    %272 = vmatprep.subr.mxu0 0.0
    %273 = vmatpush1.msra.mxu0 0.0
    %274 = vmatprep.subr.mxu0 0.0
    %275 = vmatpush1.msra.mxu0 0.0
    %276 = vmatprep.subr.mxu0 0.0
    %277 = vmatpush1.msra.mxu0 0.0
    %278 = vmatprep.subr.mxu0 0.0
    %279 = vmatpush1.msra.mxu0 0.0
    %280 = vmatprep.subr.mxu0 0.0
    %281 = vmatpush1.msra.mxu0 0.0
    %282 = vmatprep.subr.mxu0 0.0
    %283 = vmatpush1.msra.mxu0 0.0
    %284 = vmatprep.mubr.f32.mxu0 0.0
    %285 = vmatmul.mubr.f32.gmra.mrb[0].mxu0 %v76
    %v286 = vpop.f32.mrb[0].mxu0
    %v287 = vadd.f32 0.0, %v286
    %v288 = vpop.f32.mrb[0].mxu0
    %v289 = vadd.f32 0.0, %v288
    %290 = vdwg.mxu0
    %291 = vmatprep.subr.mxu0 %v49
    %292 = vmatpush1.msra.mxu0 %v48
    %293 = vmatprep.subr.mxu0 %v57
    %294 = vmatpush1.msra.mxu0 %v56
    %295 = vmatprep.subr.mxu0 %v65
    %296 = vmatpush1.msra.mxu0 %v64
    %297 = vmatprep.subr.mxu0 %v73
    %298 = vmatpush1.msra.mxu0 %v72
    %299 = vmatprep.subr.mxu0 0.0
    %300 = vmatpush1.msra.mxu0 0.0
    %301 = vmatprep.subr.mxu0 0.0
    %302 = vmatpush1.msra.mxu0 0.0
    %303 = vmatprep.subr.mxu0 0.0
    %304 = vmatpush1.msra.mxu0 0.0
    %305 = vmatprep.subr.mxu0 0.0
    %306 = vmatpush1.msra.mxu0 0.0
    %307 = vmatprep.subr.mxu0 0.0
    %308 = vmatpush1.msra.mxu0 0.0
    %309 = vmatprep.subr.mxu0 0.0
    %310 = vmatpush1.msra.mxu0 0.0
    %311 = vmatprep.subr.mxu0 0.0
    %312 = vmatpush1.msra.mxu0 0.0
    %313 = vmatprep.subr.mxu0 0.0
    %314 = vmatpush1.msra.mxu0 0.0
    %315 = vmatprep.subr.mxu0 0.0
    %316 = vmatpush1.msra.mxu0 0.0
    %317 = vmatprep.subr.mxu0 0.0
    %318 = vmatpush1.msra.mxu0 0.0
    %319 = vmatprep.subr.mxu0 0.0
    %320 = vmatpush1.msra.mxu0 0.0
    %321 = vmatprep.subr.mxu0 0.0
    %322 = vmatpush1.msra.mxu0 0.0
    %323 = vmatprep.subr.mxu0 0.0
    %324 = vmatpush1.msra.mxu0 0.0
    %325 = vmatprep.subr.mxu0 0.0
    %326 = vmatpush1.msra.mxu0 0.0
    %327 = vmatprep.subr.mxu0 0.0
    %328 = vmatpush1.msra.mxu0 0.0
    %329 = vmatprep.subr.mxu0 0.0
    %330 = vmatpush1.msra.mxu0 0.0
    %331 = vmatprep.subr.mxu0 0.0
    %332 = vmatpush1.msra.mxu0 0.0
    %333 = vmatprep.subr.mxu0 0.0
    %334 = vmatpush1.msra.mxu0 0.0
    %335 = vmatprep.subr.mxu0 0.0
    %336 = vmatpush1.msra.mxu0 0.0
    %337 = vmatprep.subr.mxu0 0.0
    %338 = vmatpush1.msra.mxu0 0.0
    %339 = vmatprep.subr.mxu0 0.0
    %340 = vmatpush1.msra.mxu0 0.0
    %341 = vmatprep.subr.mxu0 0.0
    %342 = vmatpush1.msra.mxu0 0.0
    %343 = vmatprep.subr.mxu0 0.0
    %344 = vmatpush1.msra.mxu0 0.0
    %345 = vmatprep.subr.mxu0 0.0
    %346 = vmatpush1.msra.mxu0 0.0
    %347 = vmatprep.subr.mxu0 0.0
    %348 = vmatpush1.msra.mxu0 0.0
    %349 = vmatprep.subr.mxu0 0.0
    %350 = vmatpush1.msra.mxu0 0.0
    %351 = vmatprep.subr.mxu0 0.0
    %352 = vmatpush1.msra.mxu0 0.0
    %353 = vmatprep.subr.mxu0 0.0
    %354 = vmatpush1.msra.mxu0 0.0
    %355 = vmatprep.mubr.f32.mxu0 0.0
    %356 = vmatmul.mubr.f32.gmra.mrb[0].mxu0 %v76
    %v357 = vpop.f32.mrb[0].mxu0
    %v358 = vadd.f32 0.0, %v357
    %v359 = vpop.f32.mrb[0].mxu0
    %v360 = vadd.f32 0.0, %v359
    %361 = vdwg.mxu0
    %v362 = vld [vmem:[%s1] sm:$0x3]
    %v363 = vld [vmem:[#allocation3] sm:$0xff]
    %v364 = vld [vmem:[#allocation3 + $0x8] sm:$0xff]
    %v365 = vld [vmem:[#allocation3 + $0x10] sm:$0xff]
    %v366 = vld [vmem:[#allocation3 + $0x18] sm:$0xff]
    %v367 = vld [vmem:[#allocation3 + $0x20] sm:$0xff]
    %v368 = vld [vmem:[#allocation3 + $0x28] sm:$0xff]
    %v369 = vld [vmem:[#allocation3 + $0x30] sm:$0xff]
    %v370 = vld [vmem:[#allocation3 + $0x38] sm:$0xff]
    %v371 = vld [vmem:[#allocation3 + $0x40] sm:$0xff]
    %v372 = vld [vmem:[#allocation3 + $0x48] sm:$0xff]
    %v373 = vld [vmem:[#allocation3 + $0x50] sm:$0xff]
    %v374 = vld [vmem:[#allocation3 + $0x58] sm:$0xff]
    %v375 = vld [vmem:[#allocation3 + $0x60] sm:$0xff]
    %v376 = vld [vmem:[#allocation3 + $0x68] sm:$0xff]
    %v377 = vld [vmem:[#allocation3 + $0x70] sm:$0xff]
    %v378 = vld [vmem:[#allocation3 + $0x78] sm:$0xff]
    %v379 = vld [vmem:[#allocation3 + $0x80] sm:$0xff]
    %v380 = vld [vmem:[#allocation3 + $0x88] sm:$0xff]
    %v381 = vld [vmem:[#allocation3 + $0x90] sm:$0xff]
    %v382 = vld [vmem:[#allocation3 + $0x98] sm:$0xff]
    %v383 = vld [vmem:[#allocation3 + $0xa0] sm:$0xff]
    %v384 = vld [vmem:[#allocation3 + $0xa8] sm:$0xff]
    %v385 = vld [vmem:[#allocation3 + $0xb0] sm:$0xff]
    %v386 = vld [vmem:[#allocation3 + $0xb8] sm:$0xff]
    %v387 = vld [vmem:[#allocation3 + $0xc0] sm:$0xff]
    %v388 = vld [vmem:[#allocation3 + $0xc8] sm:$0xff]
    %v389 = vld [vmem:[#allocation3 + $0xd0] sm:$0xff]
    %v390 = vld [vmem:[#allocation3 + $0xd8] sm:$0xff]
    %v391 = vld [vmem:[#allocation3 + $0xe0] sm:$0xff]
    %v392 = vld [vmem:[#allocation3 + $0xe8] sm:$0xff]
    %v393 = vld [vmem:[#allocation3 + $0xf0] sm:$0xff]
    %v394 = vld [vmem:[#allocation3 + $0xf8] sm:$0xff]
    %v396 = vsel %vm74, %v362, 0
    %398 = vmatprep.subr.mxu0 %v364
    %399 = vmatpush1.msra.mxu0 %v363
    %400 = vmatprep.subr.mxu0 %v372
    %401 = vmatpush1.msra.mxu0 %v371
    %402 = vmatprep.subr.mxu0 %v380
    %403 = vmatpush1.msra.mxu0 %v379
    %404 = vmatprep.subr.mxu0 %v388
    %405 = vmatpush1.msra.mxu0 %v387
    %406 = vmatprep.subr.mxu0 0.0
    %407 = vmatpush1.msra.mxu0 0.0
    %408 = vmatprep.subr.mxu0 0.0
    %409 = vmatpush1.msra.mxu0 0.0
    %410 = vmatprep.subr.mxu0 0.0
    %411 = vmatpush1.msra.mxu0 0.0
    %412 = vmatprep.subr.mxu0 0.0
    %413 = vmatpush1.msra.mxu0 0.0
    %414 = vmatprep.subr.mxu0 0.0
    %415 = vmatpush1.msra.mxu0 0.0
    %416 = vmatprep.subr.mxu0 0.0
    %417 = vmatpush1.msra.mxu0 0.0
    %418 = vmatprep.subr.mxu0 0.0
    %419 = vmatpush1.msra.mxu0 0.0
    %420 = vmatprep.subr.mxu0 0.0
    %421 = vmatpush1.msra.mxu0 0.0
    %422 = vmatprep.subr.mxu0 0.0
    %423 = vmatpush1.msra.mxu0 0.0
    %424 = vmatprep.subr.mxu0 0.0
    %425 = vmatpush1.msra.mxu0 0.0
    %426 = vmatprep.subr.mxu0 0.0
    %427 = vmatpush1.msra.mxu0 0.0
    %428 = vmatprep.subr.mxu0 0.0
    %429 = vmatpush1.msra.mxu0 0.0
    %430 = vmatprep.subr.mxu0 0.0
    %431 = vmatpush1.msra.mxu0 0.0
    %432 = vmatprep.subr.mxu0 0.0
    %433 = vmatpush1.msra.mxu0 0.0
    %434 = vmatprep.subr.mxu0 0.0
    %435 = vmatpush1.msra.mxu0 0.0
    %436 = vmatprep.subr.mxu0 0.0
    %437 = vmatpush1.msra.mxu0 0.0
    %438 = vmatprep.subr.mxu0 0.0
    %439 = vmatpush1.msra.mxu0 0.0
    %440 = vmatprep.subr.mxu0 0.0
    %441 = vmatpush1.msra.mxu0 0.0
    %442 = vmatprep.subr.mxu0 0.0
    %443 = vmatpush1.msra.mxu0 0.0
    %444 = vmatprep.subr.mxu0 0.0
    %445 = vmatpush1.msra.mxu0 0.0
    %446 = vmatprep.subr.mxu0 0.0
    %447 = vmatpush1.msra.mxu0 0.0
    %448 = vmatprep.subr.mxu0 0.0
    %449 = vmatpush1.msra.mxu0 0.0
    %450 = vmatprep.subr.mxu0 0.0
    %451 = vmatpush1.msra.mxu0 0.0
    %452 = vmatprep.subr.mxu0 0.0
    %453 = vmatpush1.msra.mxu0 0.0
    %454 = vmatprep.subr.mxu0 0.0
    %455 = vmatpush1.msra.mxu0 0.0
    %456 = vmatprep.subr.mxu0 0.0
    %457 = vmatpush1.msra.mxu0 0.0
    %458 = vmatprep.subr.mxu0 0.0
    %459 = vmatpush1.msra.mxu0 0.0
    %460 = vmatprep.subr.mxu0 0.0
    %461 = vmatpush1.msra.mxu0 0.0
    %462 = vmatprep.mubr.f32.mxu0 0.0
    %463 = vmatmul.mubr.f32.gmra.mrb[0].mxu0 %v396
    %v464 = vpop.f32.mrb[0].mxu0
    %v465 = vadd.f32 0.0, %v464
    %v466 = vpop.f32.mrb[0].mxu0
    %v467 = vadd.f32 0.0, %v466
    %468 = vdwg.mxu0
    %469 = vmatprep.subr.mxu0 %v366
    %470 = vmatpush1.msra.mxu0 %v365
    %471 = vmatprep.subr.mxu0 %v374
    %472 = vmatpush1.msra.mxu0 %v373
    %473 = vmatprep.subr.mxu0 %v382
    %474 = vmatpush1.msra.mxu0 %v381
    %475 = vmatprep.subr.mxu0 %v390
    %476 = vmatpush1.msra.mxu0 %v389
    %477 = vmatprep.subr.mxu0 0.0
    %478 = vmatpush1.msra.mxu0 0.0
    %479 = vmatprep.subr.mxu0 0.0
    %480 = vmatpush1.msra.mxu0 0.0
    %481 = vmatprep.subr.mxu0 0.0
    %482 = vmatpush1.msra.mxu0 0.0
    %483 = vmatprep.subr.mxu0 0.0
    %484 = vmatpush1.msra.mxu0 0.0
    %485 = vmatprep.subr.mxu0 0.0
    %486 = vmatpush1.msra.mxu0 0.0
    %487 = vmatprep.subr.mxu0 0.0
    %488 = vmatpush1.msra.mxu0 0.0
    %489 = vmatprep.subr.mxu0 0.0
    %490 = vmatpush1.msra.mxu0 0.0
    %491 = vmatprep.subr.mxu0 0.0
    %492 = vmatpush1.msra.mxu0 0.0
    %493 = vmatprep.subr.mxu0 0.0
    %494 = vmatpush1.msra.mxu0 0.0
    %495 = vmatprep.subr.mxu0 0.0
    %496 = vmatpush1.msra.mxu0 0.0
    %497 = vmatprep.subr.mxu0 0.0
    %498 = vmatpush1.msra.mxu0 0.0
    %499 = vmatprep.subr.mxu0 0.0
    %500 = vmatpush1.msra.mxu0 0.0
    %501 = vmatprep.subr.mxu0 0.0
    %502 = vmatpush1.msra.mxu0 0.0
    %503 = vmatprep.subr.mxu0 0.0
    %504 = vmatpush1.msra.mxu0 0.0
    %505 = vmatprep.subr.mxu0 0.0
    %506 = vmatpush1.msra.mxu0 0.0
    %507 = vmatprep.subr.mxu0 0.0
    %508 = vmatpush1.msra.mxu0 0.0
    %509 = vmatprep.subr.mxu0 0.0
    %510 = vmatpush1.msra.mxu0 0.0
    %511 = vmatprep.subr.mxu0 0.0
    %512 = vmatpush1.msra.mxu0 0.0
    %513 = vmatprep.subr.mxu0 0.0
    %514 = vmatpush1.msra.mxu0 0.0
    %515 = vmatprep.subr.mxu0 0.0
    %516 = vmatpush1.msra.mxu0 0.0
    %517 = vmatprep.subr.mxu0 0.0
    %518 = vmatpush1.msra.mxu0 0.0
    %519 = vmatprep.subr.mxu0 0.0
    %520 = vmatpush1.msra.mxu0 0.0
    %521 = vmatprep.subr.mxu0 0.0
    %522 = vmatpush1.msra.mxu0 0.0
    %523 = vmatprep.subr.mxu0 0.0
    %524 = vmatpush1.msra.mxu0 0.0
    %525 = vmatprep.subr.mxu0 0.0
    %526 = vmatpush1.msra.mxu0 0.0
    %527 = vmatprep.subr.mxu0 0.0
    %528 = vmatpush1.msra.mxu0 0.0
    %529 = vmatprep.subr.mxu0 0.0
    %530 = vmatpush1.msra.mxu0 0.0
    %531 = vmatprep.subr.mxu0 0.0
    %532 = vmatpush1.msra.mxu0 0.0
    %533 = vmatprep.mubr.f32.mxu0 0.0
    %534 = vmatmul.mubr.f32.gmra.mrb[0].mxu0 %v396
    %v535 = vpop.f32.mrb[0].mxu0
    %v536 = vadd.f32 0.0, %v535
    %v537 = vpop.f32.mrb[0].mxu0
    %v538 = vadd.f32 0.0, %v537
    %539 = vdwg.mxu0
    %540 = vmatprep.subr.mxu0 %v368
    %541 = vmatpush1.msra.mxu0 %v367
    %542 = vmatprep.subr.mxu0 %v376
    %543 = vmatpush1.msra.mxu0 %v375
    %544 = vmatprep.subr.mxu0 %v384
    %545 = vmatpush1.msra.mxu0 %v383
    %546 = vmatprep.subr.mxu0 %v392
    %547 = vmatpush1.msra.mxu0 %v391
    %548 = vmatprep.subr.mxu0 0.0
    %549 = vmatpush1.msra.mxu0 0.0
    %550 = vmatprep.subr.mxu0 0.0
    %551 = vmatpush1.msra.mxu0 0.0
    %552 = vmatprep.subr.mxu0 0.0
    %553 = vmatpush1.msra.mxu0 0.0
    %554 = vmatprep.subr.mxu0 0.0
    %555 = vmatpush1.msra.mxu0 0.0
    %556 = vmatprep.subr.mxu0 0.0
    %557 = vmatpush1.msra.mxu0 0.0
    %558 = vmatprep.subr.mxu0 0.0
    %559 = vmatpush1.msra.mxu0 0.0
    %560 = vmatprep.subr.mxu0 0.0
    %561 = vmatpush1.msra.mxu0 0.0
    %562 = vmatprep.subr.mxu0 0.0
    %563 = vmatpush1.msra.mxu0 0.0
    %564 = vmatprep.subr.mxu0 0.0
    %565 = vmatpush1.msra.mxu0 0.0
    %566 = vmatprep.subr.mxu0 0.0
    %567 = vmatpush1.msra.mxu0 0.0
    %568 = vmatprep.subr.mxu0 0.0
    %569 = vmatpush1.msra.mxu0 0.0
    %570 = vmatprep.subr.mxu0 0.0
    %571 = vmatpush1.msra.mxu0 0.0
    %572 = vmatprep.subr.mxu0 0.0
    %573 = vmatpush1.msra.mxu0 0.0
    %574 = vmatprep.subr.mxu0 0.0
    %575 = vmatpush1.msra.mxu0 0.0
    %576 = vmatprep.subr.mxu0 0.0
    %577 = vmatpush1.msra.mxu0 0.0
    %578 = vmatprep.subr.mxu0 0.0
    %579 = vmatpush1.msra.mxu0 0.0
    %580 = vmatprep.subr.mxu0 0.0
    %581 = vmatpush1.msra.mxu0 0.0
    %582 = vmatprep.subr.mxu0 0.0
    %583 = vmatpush1.msra.mxu0 0.0
    %584 = vmatprep.subr.mxu0 0.0
    %585 = vmatpush1.msra.mxu0 0.0
    %586 = vmatprep.subr.mxu0 0.0
    %587 = vmatpush1.msra.mxu0 0.0
    %588 = vmatprep.subr.mxu0 0.0
    %589 = vmatpush1.msra.mxu0 0.0
    %590 = vmatprep.subr.mxu0 0.0
    %591 = vmatpush1.msra.mxu0 0.0
    %592 = vmatprep.subr.mxu0 0.0
    %593 = vmatpush1.msra.mxu0 0.0
    %594 = vmatprep.subr.mxu0 0.0
    %595 = vmatpush1.msra.mxu0 0.0
    %596 = vmatprep.subr.mxu0 0.0
    %597 = vmatpush1.msra.mxu0 0.0
    %598 = vmatprep.subr.mxu0 0.0
    %599 = vmatpush1.msra.mxu0 0.0
    %600 = vmatprep.subr.mxu0 0.0
    %601 = vmatpush1.msra.mxu0 0.0
    %602 = vmatprep.subr.mxu0 0.0
    %603 = vmatpush1.msra.mxu0 0.0
    %604 = vmatprep.mubr.f32.mxu0 0.0
    %605 = vmatmul.mubr.f32.gmra.mrb[0].mxu0 %v396
    %v606 = vpop.f32.mrb[0].mxu0
    %v607 = vadd.f32 0.0, %v606
    %v608 = vpop.f32.mrb[0].mxu0
    %v609 = vadd.f32 0.0, %v608
    %610 = vdwg.mxu0
    %611 = vmatprep.subr.mxu0 %v370
    %612 = vmatpush1.msra.mxu0 %v369
    %613 = vmatprep.subr.mxu0 %v378
    %614 = vmatpush1.msra.mxu0 %v377
    %615 = vmatprep.subr.mxu0 %v386
    %616 = vmatpush1.msra.mxu0 %v385
    %617 = vmatprep.subr.mxu0 %v394
    %618 = vmatpush1.msra.mxu0 %v393
    %619 = vmatprep.subr.mxu0 0.0
    %620 = vmatpush1.msra.mxu0 0.0
    %621 = vmatprep.subr.mxu0 0.0
    %622 = vmatpush1.msra.mxu0 0.0
    %623 = vmatprep.subr.mxu0 0.0
    %624 = vmatpush1.msra.mxu0 0.0
    %625 = vmatprep.subr.mxu0 0.0
    %626 = vmatpush1.msra.mxu0 0.0
    %627 = vmatprep.subr.mxu0 0.0
    %628 = vmatpush1.msra.mxu0 0.0
    %629 = vmatprep.subr.mxu0 0.0
    %630 = vmatpush1.msra.mxu0 0.0
    %631 = vmatprep.subr.mxu0 0.0
    %632 = vmatpush1.msra.mxu0 0.0
    %633 = vmatprep.subr.mxu0 0.0
    %634 = vmatpush1.msra.mxu0 0.0
    %635 = vmatprep.subr.mxu0 0.0
    %636 = vmatpush1.msra.mxu0 0.0
    %637 = vmatprep.subr.mxu0 0.0
    %638 = vmatpush1.msra.mxu0 0.0
    %639 = vmatprep.subr.mxu0 0.0
    %640 = vmatpush1.msra.mxu0 0.0
    %641 = vmatprep.subr.mxu0 0.0
    %642 = vmatpush1.msra.mxu0 0.0
    %643 = vmatprep.subr.mxu0 0.0
    %644 = vmatpush1.msra.mxu0 0.0
    %645 = vmatprep.subr.mxu0 0.0
    %646 = vmatpush1.msra.mxu0 0.0
    %647 = vmatprep.subr.mxu0 0.0
    %648 = vmatpush1.msra.mxu0 0.0
    %649 = vmatprep.subr.mxu0 0.0
    %650 = vmatpush1.msra.mxu0 0.0
    %651 = vmatprep.subr.mxu0 0.0
    %652 = vmatpush1.msra.mxu0 0.0
    %653 = vmatprep.subr.mxu0 0.0
    %654 = vmatpush1.msra.mxu0 0.0
    %655 = vmatprep.subr.mxu0 0.0
    %656 = vmatpush1.msra.mxu0 0.0
    %657 = vmatprep.subr.mxu0 0.0
    %658 = vmatpush1.msra.mxu0 0.0
    %659 = vmatprep.subr.mxu0 0.0
    %660 = vmatpush1.msra.mxu0 0.0
    %661 = vmatprep.subr.mxu0 0.0
    %662 = vmatpush1.msra.mxu0 0.0
    %663 = vmatprep.subr.mxu0 0.0
    %664 = vmatpush1.msra.mxu0 0.0
    %665 = vmatprep.subr.mxu0 0.0
    %666 = vmatpush1.msra.mxu0 0.0
    %667 = vmatprep.subr.mxu0 0.0
    %668 = vmatpush1.msra.mxu0 0.0
    %669 = vmatprep.subr.mxu0 0.0
    %670 = vmatpush1.msra.mxu0 0.0
    %671 = vmatprep.subr.mxu0 0.0
    %672 = vmatpush1.msra.mxu0 0.0
    %673 = vmatprep.subr.mxu0 0.0
    %674 = vmatpush1.msra.mxu0 0.0
    %675 = vmatprep.mubr.f32.mxu0 0.0
    %676 = vmatmul.mubr.f32.gmra.mrb[0].mxu0 %v396
    %v677 = vpop.f32.mrb[0].mxu0
    %v678 = vadd.f32 0.0, %v677
    %v679 = vpop.f32.mrb[0].mxu0
    %v680 = vadd.f32 0.0, %v679
    %681 = vdwg.mxu0
    %v690 = vrot.slane %v465, 6
    %v691 = vrot.slane %v467, 6
    %v692 = vrot.slane %v536, 6
    %v693 = vrot.slane %v538, 6
    %v694 = vrot.slane %v607, 6
    %v695 = vrot.slane %v609, 6
    %v696 = vrot.slane %v678, 6
    %v697 = vrot.slane %v680, 6
    %vm706 = vcmask 1041408
    %v707 = vsel %vm706, %v145, %v690
    %v708 = vsel %vm706, %v147, %v691
    %v709 = vsel %vm706, %v216, %v692
    %v710 = vsel %vm706, %v218, %v693
    %v711 = vsel %vm706, %v287, %v694
    %v712 = vsel %vm706, %v289, %v695
    %v713 = vsel %vm706, %v358, %v696
    %v714 = vsel %vm706, %v360, %v697
    %v715 = vld [vmem:[%s4] sm:$0xff]
    %v716 = vld [vmem:[%s4 + $0x8] sm:$0xff]
    %v717 = vld [vmem:[%s4 + $0x10] sm:$0xff]
    %v718 = vld [vmem:[%s4 + $0x18] sm:$0xff]
    %v723 = vcombine.high %v715, %v715
    %v724 = vcombine.high %v716, %v716
    %v725 = vcombine.high %v717, %v717
    %v726 = vcombine.high %v718, %v718
    %v731 = vadd.f32 %v707, %v715
    %v732 = vadd.f32 %v708, %v723
    %v733 = vadd.f32 %v709, %v716
    %v734 = vadd.f32 %v710, %v724
    %v735 = vadd.f32 %v711, %v717
    %v736 = vadd.f32 %v712, %v725
    %v737 = vadd.f32 %v713, %v718
    %v738 = vadd.f32 %v714, %v726
    %v739 = vmax.f32 %v731, 0.0
    %v740 = vmax.f32 %v732, 0.0
    %v741 = vmax.f32 %v733, 0.0
    %v742 = vmax.f32 %v734, 0.0
    %v743 = vmax.f32 %v735, 0.0
    %v744 = vmax.f32 %v736, 0.0
    %v745 = vmax.f32 %v737, 0.0
    %v746 = vmax.f32 %v738, 0.0
    %v747 = vmax.f32 %v739, %v743
    %v748 = vmax.f32 %v740, %v744
    %v749 = vmax.f32 %v741, %v745
    %v750 = vmax.f32 %v742, %v746
    %v751 = vmax.f32 %v747, %v749
    %v752 = vmax.f32 %v748, %v750
    %v753 = vld [vmem:[%s5] sm:$0xff]
    %v754 = vld [vmem:[%s5 + $0x8] sm:$0xff]
    %v755 = vld [vmem:[%s5 + $0x10] sm:$0xff]
    %v756 = vld [vmem:[%s5 + $0x18] sm:$0xff]
    %v757 = vld [vmem:[%s5 + $0x20] sm:$0xff]
    %v758 = vld [vmem:[%s5 + $0x28] sm:$0xff]
    %v759 = vld [vmem:[%s5 + $0x30] sm:$0xff]
    %v760 = vld [vmem:[%s5 + $0x38] sm:$0xff]
    %v761 = vld [vmem:[%s5 + $0x40] sm:$0xff]
    %v762 = vld [vmem:[%s5 + $0x48] sm:$0xff]
    %v763 = vld [vmem:[%s5 + $0x50] sm:$0xff]
    %v764 = vld [vmem:[%s5 + $0x58] sm:$0xff]
    %v765 = vld [vmem:[%s5 + $0x60] sm:$0xff]
    %v766 = vld [vmem:[%s5 + $0x68] sm:$0xff]
    %v767 = vld [vmem:[%s5 + $0x70] sm:$0xff]
    %v768 = vld [vmem:[%s5 + $0x78] sm:$0xff]
    %v769 = vld [vmem:[%s5 + $0x80] sm:$0xff]
    %v770 = vld [vmem:[%s5 + $0x88] sm:$0xff]
    %v771 = vld [vmem:[%s5 + $0x90] sm:$0xff]
    %v772 = vld [vmem:[%s5 + $0x98] sm:$0xff]
    %v773 = vld [vmem:[%s5 + $0xa0] sm:$0xff]
    %v774 = vld [vmem:[%s5 + $0xa8] sm:$0xff]
    %v775 = vld [vmem:[%s5 + $0xb0] sm:$0xff]
    %v776 = vld [vmem:[%s5 + $0xb8] sm:$0xff]
    %v777 = vld [vmem:[%s5 + $0xc0] sm:$0xff]
    %v778 = vld [vmem:[%s5 + $0xc8] sm:$0xff]
    %v779 = vld [vmem:[%s5 + $0xd0] sm:$0xff]
    %v780 = vld [vmem:[%s5 + $0xd8] sm:$0xff]
    %v781 = vld [vmem:[%s5 + $0xe0] sm:$0xff]
    %v782 = vld [vmem:[%s5 + $0xe8] sm:$0xff]
    %v783 = vld [vmem:[%s5 + $0xf0] sm:$0xff]
    %v784 = vld [vmem:[%s5 + $0xf8] sm:$0xff]
    %s785 = sld [smem:[#allocation2]]
    %v786 = vstv %s785
    %787 = vmatprep.subr.mxu0 0.0
    %788 = vmatpush1.msra.mxu0 %v753
    %789 = vmatprep.subr.mxu0 0.0
    %790 = vmatpush1.msra.mxu0 %v754
    %791 = vmatprep.subr.mxu0 0.0
    %792 = vmatpush1.msra.mxu0 %v755
    %793 = vmatprep.subr.mxu0 0.0
    %794 = vmatpush1.msra.mxu0 %v756
    %795 = vmatprep.subr.mxu0 0.0
    %796 = vmatpush1.msra.mxu0 %v757
    %797 = vmatprep.subr.mxu0 0.0
    %798 = vmatpush1.msra.mxu0 %v758
    %799 = vmatprep.subr.mxu0 0.0
    %800 = vmatpush1.msra.mxu0 %v759
    %801 = vmatprep.subr.mxu0 0.0
    %802 = vmatpush1.msra.mxu0 %v760
    %803 = vmatprep.subr.mxu0 0.0
    %804 = vmatpush1.msra.mxu0 %v761
    %805 = vmatprep.subr.mxu0 0.0
    %806 = vmatpush1.msra.mxu0 %v762
    %807 = vmatprep.subr.mxu0 0.0
    %808 = vmatpush1.msra.mxu0 %v763
    %809 = vmatprep.subr.mxu0 0.0
    %810 = vmatpush1.msra.mxu0 %v764
    %811 = vmatprep.subr.mxu0 0.0
    %812 = vmatpush1.msra.mxu0 %v765
    %813 = vmatprep.subr.mxu0 0.0
    %814 = vmatpush1.msra.mxu0 %v766
    %815 = vmatprep.subr.mxu0 0.0
    %816 = vmatpush1.msra.mxu0 %v767
    %817 = vmatprep.subr.mxu0 0.0
    %818 = vmatpush1.msra.mxu0 %v768
    %819 = vmatprep.subr.mxu0 0.0
    %820 = vmatpush1.msra.mxu0 %v769
    %821 = vmatprep.subr.mxu0 0.0
    %822 = vmatpush1.msra.mxu0 %v770
    %823 = vmatprep.subr.mxu0 0.0
    %824 = vmatpush1.msra.mxu0 %v771
    %825 = vmatprep.subr.mxu0 0.0
    %826 = vmatpush1.msra.mxu0 %v772
    %827 = vmatprep.subr.mxu0 0.0
    %828 = vmatpush1.msra.mxu0 %v773
    %829 = vmatprep.subr.mxu0 0.0
    %830 = vmatpush1.msra.mxu0 %v774
    %831 = vmatprep.subr.mxu0 0.0
    %832 = vmatpush1.msra.mxu0 %v775
    %833 = vmatprep.subr.mxu0 0.0
    %834 = vmatpush1.msra.mxu0 %v776
    %835 = vmatprep.subr.mxu0 0.0
    %836 = vmatpush1.msra.mxu0 %v777
    %837 = vmatprep.subr.mxu0 0.0
    %838 = vmatpush1.msra.mxu0 %v778
    %839 = vmatprep.subr.mxu0 0.0
    %840 = vmatpush1.msra.mxu0 %v779
    %841 = vmatprep.subr.mxu0 0.0
    %842 = vmatpush1.msra.mxu0 %v780
    %843 = vmatprep.subr.mxu0 0.0
    %844 = vmatpush1.msra.mxu0 %v781
    %845 = vmatprep.subr.mxu0 0.0
    %846 = vmatpush1.msra.mxu0 %v782
    %847 = vmatprep.subr.mxu0 0.0
    %848 = vmatpush1.msra.mxu0 %v783
    %849 = vmatprep.subr.mxu0 0.0
    %850 = vmatpush1.msra.mxu0 %v784
    %851 = vmatprep.mubr.f32.mxu0 %v752
    %852 = vmatmul.mubr.f32.gmra.mrb[0].mxu0 %v751
    %v853 = vpop.f32.mrb[0].mxu0
    %v854 = vadd.f32 %v786, %v853
    %v855 = vpop.f32.mrb[0].mxu0
    %856 = vdwg.mxu0
    %vm857 = vcmask 3072
    %858 = vst.msk [vmem:[%s7] sm:$0xf] %vm857, %v854
    // Predicated region
    $region34: #{multi_input_regression_forward.1} parent=1 // pred_check
      _
    $region35: #{multi_input_regression_forward.1} parent=1 // pred_check_branch
      %860 = sbr.rel (0) target = $region37
    $region36: #{multi_input_regression_forward.1} parent=1 // pred_region
      _
    $region37: #{multi_input_regression_forward.1} parent=1 // pred_fallthru
      _
    // Predicated region
    $region38: #{multi_input_regression_forward.1} parent=1 // pred_check
      _
    $region39: #{multi_input_regression_forward.1} parent=1 // pred_check_branch
      %862 = sbr.rel (0) target = $region41
    $region40: #{multi_input_regression_forward.1} parent=1 // pred_region
      _
    $region41: #{multi_input_regression_forward.1} parent=1 // pred_fallthru
      _
    %863 = vsyncpa [#allocation4], 1

</llo_original>
